<compile_context>
chip_gen: v5e
topology: v5e:2x2
jax: 0.10.0
libtpu: 0.0.40
codegen_flags: <defaults>
</compile_context>

<pallas_src>
import jax
import jax.numpy as jnp
from jax import lax
from jax.experimental import pallas as pl
from jax.experimental.pallas import tpu as pltpu

NEG_SLOPE = 0.01  # nn.LeakyReLU() default negative_slope


def _leaky_relu(v):
    # For 0 < a < 1: max(v, a*v) == leaky_relu(v). 2 VPU ops (mul + max).
    return jnp.maximum(v, NEG_SLOPE * v)


def mlp2_kernel(x_ref,
                w1_ref, b1_ref,
                w2_ref, b2_ref,
                w3_ref, b3_ref,
                ot_ref):
    """All three matmuls + LeakyReLU fused; batch ends up in the lane axis.

    x_ref  : [block_b, inp]   f32  (native input layout, no host transpose)
    wK_ref : [out_f, in_f]    bf16 (native PyTorch layout)
    bK_ref : [out_f, 1]       f32
    ot_ref : [out_dim, block_b] f32 (output transposed, lane-dense stores)
    """
    x = x_ref[...].astype(jnp.bfloat16)

    # w1 @ x^T : contract feature axis (dim 1) of both operands -> [h1, block_b].
    h = lax.dot_general(w1_ref[...], x, (((1,), (1,)), ((), ())),
                        preferred_element_type=jnp.float32)
    h = _leaky_relu(h + b1_ref[...])
    # TODO(synk): training-mode dropout (p=dr) not implemented; eval-mode identity.

    h = jnp.dot(w2_ref[...], h.astype(jnp.bfloat16),
                preferred_element_type=jnp.float32)
    h = _leaky_relu(h + b2_ref[...])

    h = jnp.dot(w3_ref[...], h.astype(jnp.bfloat16),
                preferred_element_type=jnp.float32)
    ot_ref[...] = (h + b3_ref[...]).astype(ot_ref.dtype)


def _auto_block_b(B):
    """Lane-block width for the batch axis.

    Fill the 256-wide MXU lane dim (v6e/v7x) and amortize the ~0.35us
    per-grid-step overhead (v5e serial grid), but keep >=2 grid steps when the
    batch allows so both v7x TensorCores get work.
    Block must be a multiple of 128 or equal to B (BlockSpec (8,128) rule).
    """
    if B <= 256:
        return B if B < 128 else 128
    # Two parallel steps, each a multiple of 128 lanes, capped at 2048.
    return min(2048, 128 * pl.cdiv(pl.cdiv(B, 2), 128))


def model_2hl_forward(x, params, *, block_b=None):
    """x: [B, inp] float32.

    params: dict with
      w1: [h1, inp] bf16, b1: [h1, 1] f32
      w2: [h2, h1]  bf16, b2: [h2, 1] f32
      w3: [out, h2] bf16, b3: [out, 1] f32
    Returns [B, out] float32.
    """
    B, inp = x.shape
    h1, _ = params["w1"].shape
    h2, _ = params["w2"].shape
    out_dim, _ = params["w3"].shape

    if block_b is None:
        block_b = _auto_block_b(B)
    n_blocks = pl.cdiv(B, block_b)  # ragged last block handled by Pallas masking

    def full_spec(shape):
        # Whole-array block, constant across the grid: fetched once,
        # VMEM-resident for every grid step.
        return pl.BlockSpec(shape, lambda i: (0,) * len(shape))

    in_specs = [pl.BlockSpec((block_b, inp), lambda i: (i, 0))]
    args = [x]
    for k in range(1, 4):
        w = params[f"w{k}"]
        b = params[f"b{k}"]
        in_specs.append(full_spec(w.shape))
        in_specs.append(full_spec(b.shape))
        args.append(w)
        args.append(b)

    # Output kept batch-in-lanes ([out_dim, B]) so stores are lane-dense
    # (out_dim=16 < 128 would force masked vst.msk stores if flipped).
    out_spec = pl.BlockSpec((out_dim, block_b), lambda i: (0, i))

    # Advisory cost hint for XLA's scheduler.
    flops = 2 * B * (inp * h1 + h1 * h2 + h2 * out_dim)
    bytes_accessed = (
        4 * B * inp                                 # input (f32)
        + 2 * (h1 * inp + h2 * h1 + out_dim * h2)   # weights (bf16)
        + 4 * (h1 + h2 + out_dim)                   # biases (f32)
        + 4 * B * out_dim                           # output (f32)
    )
    cost = pl.CostEstimate(flops=flops, transcendentals=0,
                           bytes_accessed=bytes_accessed)

    fn = pl.pallas_call(
        mlp2_kernel,
        out_shape=jax.ShapeDtypeStruct((out_dim, B), jnp.float32),
        grid_spec=pltpu.PrefetchScalarGridSpec(
            num_scalar_prefetch=0,
            grid=(n_blocks,),
            in_specs=in_specs,
            out_specs=out_spec,
        ),
        compiler_params=pltpu.CompilerParams(
            dimension_semantics=("parallel",),
            # Explicit limit: tiny footprint, well within v7x's 64 MiB physical.
            vmem_limit_bytes=32 * 1024 * 1024,
        ),
        cost_estimate=cost,
    )
    yt = fn(*args)   # [out_dim, B], lane-dense stores
    return yt.T      # back to [B, out_dim]; no pad -> no slice needed


def init_params(key, inp, h1, h2, out):
    """Synthetic init matching nn.Linear + kaiming_normal_ shapes.

    Weights kept in PyTorch layout [out_f, in_f], stored bf16 (MXU-native).
    kaiming_normal_ (fan_in, leaky_relu a=0 gain): std = sqrt(2 / fan_in).
    Bias: uniform(-1/sqrt(fan_in), 1/sqrt(fan_in)) like nn.Linear default,
    stored f32 as [out_f, 1] for the batch-in-lanes layout.
    """
    dims = [inp, h1, h2, out]
    params = {}
    for k in range(3):
        fan_in, fan_out = dims[k], dims[k + 1]
        key, kw, kb = jax.random.split(key, 3)
        std = (2.0 / fan_in) ** 0.5
        w = std * jax.random.normal(kw, (fan_out, fan_in), dtype=jnp.float32)
        bound = 1.0 / (fan_in ** 0.5)
        b = jax.random.uniform(kb, (fan_out, 1), minval=-bound, maxval=bound,
                               dtype=jnp.float32)
        params[f"w{k + 1}"] = w.astype(jnp.bfloat16)
        params[f"b{k + 1}"] = b
    return params


def reference_forward(x, params):
    """Pure-JAX reference with the same bf16-in / f32-accumulate numerics."""
    def lin(h, w, b):
        return jnp.dot(h.astype(jnp.bfloat16), w.T,
                       preferred_element_type=jnp.float32) + b.T
    h = lin(x, params["w1"], params["b1"])
    h = jnp.where(h > 0, h, NEG_SLOPE * h)
    h = lin(h, params["w2"], params["b2"])
    h = jnp.where(h > 0, h, NEG_SLOPE * h)
    return lin(h, params["w3"], params["b3"])


if __name__ == "__main__":
    # Small MLP shapes; batch=512 -> auto block_b=256: two "parallel" grid
    # steps of 256 lane-dense columns each (both v7x TCs busy, 256-wide MXU
    # lane dim filled on v6e/v7x, per-step overhead amortized on v5e).
    B, INP, H1, H2, OUT = 512, 32, 64, 48, 16

    key = jax.random.PRNGKey(0)
    key, kx = jax.random.split(key)
    x = jax.random.normal(kx, (B, INP), dtype=jnp.float32)
    params = init_params(key, INP, H1, H2, OUT)

    y = model_2hl_forward(x, params)
    y = jax.block_until_ready(y)

    y_ref = reference_forward(x, params)
    assert y.shape == (B, OUT)
    assert jnp.allclose(y, y_ref, atol=5e-3, rtol=5e-3), "mismatch vs reference"

    print("KERNEL_OK")
</pallas_src>

<mosaic_0001>
module attributes {stable_mosaic.version = 11 : i64} {
  func.func @mlp2_kernel(%arg0: i32, %arg1: memref<256x32xf32, #tpu.memory_space<vmem>>, %arg2: memref<64x32xbf16, #tpu.memory_space<vmem>>, %arg3: memref<64x1xf32, #tpu.memory_space<vmem>>, %arg4: memref<48x64xbf16, #tpu.memory_space<vmem>>, %arg5: memref<48x1xf32, #tpu.memory_space<vmem>>, %arg6: memref<16x48xbf16, #tpu.memory_space<vmem>>, %arg7: memref<16x1xf32, #tpu.memory_space<vmem>>, %arg8: memref<16x256xf32, #tpu.memory_space<vmem>>) attributes {dimension_semantics = [#tpu.dimension_semantics<parallel>], iteration_bounds = array<i64: 2>, scalar_prefetch = 0 : i64, scratch_operands = 0 : i64, tpu.core_type = #tpu.core_type<tc>, window_params = [{transform_indices = @transform_0, window_bounds = array<i64: 256, 32>}, {pipeline_mode = #tpu.pipeline_mode<synchronous>, transform_indices = @transform_1, window_bounds = array<i64: 64, 32>}, {pipeline_mode = #tpu.pipeline_mode<synchronous>, transform_indices = @transform_2, window_bounds = array<i64: 64, 1>}, {pipeline_mode = #tpu.pipeline_mode<synchronous>, transform_indices = @transform_3, window_bounds = array<i64: 48, 64>}, {pipeline_mode = #tpu.pipeline_mode<synchronous>, transform_indices = @transform_4, window_bounds = array<i64: 48, 1>}, {pipeline_mode = #tpu.pipeline_mode<synchronous>, transform_indices = @transform_5, window_bounds = array<i64: 16, 48>}, {pipeline_mode = #tpu.pipeline_mode<synchronous>, transform_indices = @transform_6, window_bounds = array<i64: 16, 1>}, {transform_indices = @transform_7, window_bounds = array<i64: 16, 256>}]} {
    %c0 = arith.constant 0 : index
    %c0_0 = arith.constant 0 : index
    %0 = vector.load %arg1[%c0, %c0_0] : memref<256x32xf32, #tpu.memory_space<vmem>>, vector<256x32xf32>
    %1 = arith.truncf %0 : vector<256x32xf32> to vector<256x32xbf16>
    %c0_1 = arith.constant 0 : index
    %c0_2 = arith.constant 0 : index
    %2 = vector.load %arg2[%c0_1, %c0_2] : memref<64x32xbf16, #tpu.memory_space<vmem>>, vector<64x32xbf16>
    %cst = arith.constant dense<0.000000e+00> : vector<64x256xf32>
    %3 = tpu.matmul %2, %1, %cst {dimension_numbers = #tpu.dot_dimension_numbers<[1], [1], [0], [0], [0, 0, 1, 0], [], []>} : vector<64x32xbf16>, vector<256x32xbf16>, vector<64x256xf32> -> vector<64x256xf32>
    %c0_3 = arith.constant 0 : index
    %c0_4 = arith.constant 0 : index
    %4 = vector.load %arg3[%c0_3, %c0_4] : memref<64x1xf32, #tpu.memory_space<vmem>>, vector<64x1xf32>
    %5 = vector.broadcast %4 : vector<64x1xf32> to vector<64x256xf32>
    %6 = arith.addf %3, %5 : vector<64x256xf32>
    %cst_5 = arith.constant 0.00999999977 : f32
    %7 = vector.broadcast %cst_5 : f32 to vector<64x256xf32>
    %8 = arith.mulf %7, %6 : vector<64x256xf32>
    %9 = arith.maximumf %6, %8 : vector<64x256xf32>
    %c0_6 = arith.constant 0 : index
    %c0_7 = arith.constant 0 : index
    %10 = vector.load %arg4[%c0_6, %c0_7] : memref<48x64xbf16, #tpu.memory_space<vmem>>, vector<48x64xbf16>
    %11 = arith.truncf %9 : vector<64x256xf32> to vector<64x256xbf16>
    %cst_8 = arith.constant dense<0.000000e+00> : vector<48x256xf32>
    %12 = tpu.matmul %10, %11, %cst_8 {dimension_numbers = #tpu.dot_dimension_numbers<[1], [0], [0], [1], [0, 0, 1, 1], [], []>} : vector<48x64xbf16>, vector<64x256xbf16>, vector<48x256xf32> -> vector<48x256xf32>
    %c0_9 = arith.constant 0 : index
    %c0_10 = arith.constant 0 : index
    %13 = vector.load %arg5[%c0_9, %c0_10] : memref<48x1xf32, #tpu.memory_space<vmem>>, vector<48x1xf32>
    %14 = vector.broadcast %13 : vector<48x1xf32> to vector<48x256xf32>
    %15 = arith.addf %12, %14 : vector<48x256xf32>
    %cst_11 = arith.constant 0.00999999977 : f32
    %16 = vector.broadcast %cst_11 : f32 to vector<48x256xf32>
    %17 = arith.mulf %16, %15 : vector<48x256xf32>
    %18 = arith.maximumf %15, %17 : vector<48x256xf32>
    %c0_12 = arith.constant 0 : index
    %c0_13 = arith.constant 0 : index
    %19 = vector.load %arg6[%c0_12, %c0_13] : memref<16x48xbf16, #tpu.memory_space<vmem>>, vector<16x48xbf16>
    %20 = arith.truncf %18 : vector<48x256xf32> to vector<48x256xbf16>
    %cst_14 = arith.constant dense<0.000000e+00> : vector<16x256xf32>
    %21 = tpu.matmul %19, %20, %cst_14 {dimension_numbers = #tpu.dot_dimension_numbers<[1], [0], [0], [1], [0, 0, 1, 1], [], []>} : vector<16x48xbf16>, vector<48x256xbf16>, vector<16x256xf32> -> vector<16x256xf32>
    %c0_15 = arith.constant 0 : index
    %c0_16 = arith.constant 0 : index
    %22 = vector.load %arg7[%c0_15, %c0_16] : memref<16x1xf32, #tpu.memory_space<vmem>>, vector<16x1xf32>
    %23 = vector.broadcast %22 : vector<16x1xf32> to vector<16x256xf32>
    %24 = arith.addf %21, %23 : vector<16x256xf32>
    %c0_17 = arith.constant 0 : index
    %c0_18 = arith.constant 0 : index
    %25 = vector.load %arg8[%c0_17, %c0_18] : memref<16x256xf32, #tpu.memory_space<vmem>>, vector<16x256xf32>
    tpu.vector_store %arg8[%c0_17, %c0_18], %24 {strides = array<i32>} : memref<16x256xf32, #tpu.memory_space<vmem>>, vector<16x256xf32>,
    return
  }
  func.func @transform_0(%arg0: i32) -> (i32, i32) {
    %c0_i32 = arith.constant 0 : i32
    %c0_i32_0 = arith.constant 0 : i32
    return %arg0, %c0_i32 : i32, i32
  }
  func.func @transform_1(%arg0: i32) -> (i32, i32) {
    %c0_i32 = arith.constant 0 : i32
    %c0_i32_0 = arith.constant 0 : i32
    %c0_i32_1 = arith.constant 0 : i32
    return %c0_i32, %c0_i32_0 : i32, i32
  }
  func.func @transform_2(%arg0: i32) -> (i32, i32) {
    %c0_i32 = arith.constant 0 : i32
    %c0_i32_0 = arith.constant 0 : i32
    %c0_i32_1 = arith.constant 0 : i32
    return %c0_i32, %c0_i32_0 : i32, i32
  }
  func.func @transform_3(%arg0: i32) -> (i32, i32) {
    %c0_i32 = arith.constant 0 : i32
    %c0_i32_0 = arith.constant 0 : i32
    %c0_i32_1 = arith.constant 0 : i32
    return %c0_i32, %c0_i32_0 : i32, i32
  }
  func.func @transform_4(%arg0: i32) -> (i32, i32) {
    %c0_i32 = arith.constant 0 : i32
    %c0_i32_0 = arith.constant 0 : i32
    %c0_i32_1 = arith.constant 0 : i32
    return %c0_i32, %c0_i32_0 : i32, i32
  }
  func.func @transform_5(%arg0: i32) -> (i32, i32) {
    %c0_i32 = arith.constant 0 : i32
    %c0_i32_0 = arith.constant 0 : i32
    %c0_i32_1 = arith.constant 0 : i32
    return %c0_i32, %c0_i32_0 : i32, i32
  }
  func.func @transform_6(%arg0: i32) -> (i32, i32) {
    %c0_i32 = arith.constant 0 : i32
    %c0_i32_0 = arith.constant 0 : i32
    %c0_i32_1 = arith.constant 0 : i32
    return %c0_i32, %c0_i32_0 : i32, i32
  }
  func.func @transform_7(%arg0: i32) -> (i32, i32) {
    %c0_i32 = arith.constant 0 : i32
    %c0_i32_0 = arith.constant 0 : i32
    return %c0_i32, %arg0 : i32, i32
  }
}

</mosaic_0001>

<llo_original>
// kernel: tpu_custom_call.1
$region0: #{tpu_custom_call.1}
  #allocation0 [shape = 'u32[]', space=smem, size = 0x4, offset = 0x4, fixed_abs, tag = 'smem constant byte address 0x4 - core index']
  #allocation1 [shape = 'u32[72,128]{1,0:T(1,128)}', space=vmem, size = 0x9000, scoped, tag = 'internal scratch']
  %s0 = inlined_call_operand.vmem [shape: f32[512,32], index: 0, kind: input, shape index: {}]
  %s1 = inlined_call_operand.vmem [shape: bf16[64,32], index: 1, kind: input, shape index: {}]
  %s2 = inlined_call_operand.vmem [shape: f32[64,1], index: 2, kind: input, shape index: {}]
  %s3 = inlined_call_operand.vmem [shape: bf16[48,64], index: 3, kind: input, shape index: {}]
  %s4 = inlined_call_operand.vmem [shape: f32[48,1], index: 4, kind: input, shape index: {}]
  %s5 = inlined_call_operand.vmem [shape: bf16[16,48], index: 5, kind: input, shape index: {}]
  %s6 = inlined_call_operand.vmem [shape: f32[16,1], index: 6, kind: input, shape index: {}]
  %s7 = inlined_call_operand.hbm [shape: f32[16,512], index: 7, kind: output, shape index: {}]
  %s8 = sld [smem:[#allocation0]]
  $region61: #{tpu_custom_call.1} parent=0
    _
  %s10 = ssub.s32 1, %s8
  %s11 = scalar_select 0, %s10, %s8
  $region1: #{tpu_custom_call.1} parent=0
    #allocation2 [shape = 'u8[32768]{0}', space=vmem, size = 0x8000, scoped, tag = 'output window, operand 0']
    #allocation3 [shape = 's32[2]{0}', space=sflag, size = 0x8, scoped, tag = 'scoped memory for tpu_custom_call.1']
    %12 = vsyncpa [#allocation3], 0
    %s13 = scalar_lea.sflag [#allocation3], 1
    %14 = vsyncpa %s13, 0
    loop: start=0, step=1, limit=4
    $region2: #{tpu_custom_call.1} parent=1 // loop_pre_header
      _
    $region3: #{tpu_custom_call.1} parent=1 // loop_header
      %s16 = sphi 0, %s20
      %p17 = scmp.ge.s32.totalorder %s16, 4
      %s26 = sphi 0, %s28
      %s29 = sphi 0, %s26
      %s30 = sphi 0, %s29
      %s46 = sphi 0, %s30
      %s50 = sphi 0, %s50
      %s52 = sphi 0, %s50
      %s53 = sphi 0, %s52
      %s67 = sphi 0, %s53
      %s71 = sphi 0, %s71
      %s73 = sphi 0, %s71
      %s74 = sphi 0, %s73
      %s88 = sphi 0, %s74
      %s92 = sphi 0, %s92
      %s94 = sphi 0, %s92
      %s95 = sphi 0, %s94
      %s109 = sphi 0, %s95
      %s113 = sphi 0, %s113
      %s115 = sphi 0, %s113
      %s116 = sphi 0, %s115
      %s130 = sphi 0, %s116
      %s134 = sphi 0, %s134
      %s136 = sphi 0, %s134
      %s137 = sphi 0, %s136
      %s151 = sphi 0, %s137
      %s155 = sphi 0, %s155
      %s157 = sphi 0, %s155
      %s158 = sphi 0, %s157
      %s172 = sphi 0, %s158
      %s178 = sphi 0, %s180
      %s181 = sphi 0, %s178
      %s182 = sphi 0, %s181
      %s198 = sphi 0, %s182
    $region4: #{tpu_custom_call.1} parent=1 // loop_header_branch
      %19 = sbr.rel (%p17) target = $region8
    $region5: #{tpu_custom_call.1} parent=1 // loop_body
      %s21 = ssub.s32 %s16, 1
      %s22 = ssub.s32 %s16, 2
      %s23 = sadd.s32 %s16, 1
      %s24 = ssub.s32 %s16, %s23
      %p25 = scmp.eq.s32.totalorder %s24, 0
      %s27 = sadd.s32 %s26, 1
      %s28 = scalar_select %p25, %s26, %s27
      %p31 = pneg %p25
      %p32 = scmp.eq.s32.totalorder %s16, 1
      %p33 = por %p31, %p32
      %p34 = scmp.ne.s32.totalorder %s26, %s29
      %p35 = scmp.eq.s32.totalorder %s16, 0
      %p36 = por %p34, %p35
      %p37 = scmp.ne.s32.totalorder %s26, %s29
      %p38 = scmp.eq.s32.totalorder %s21, 1
      %p39 = por %p37, %p38
      %p40 = scmp.ne.s32.totalorder %s29, %s30
      %p41 = scmp.eq.s32.totalorder %s21, 0
      %p42 = por %p40, %p41
      %p43 = scmp.ne.s32.totalorder %s29, %s30
      %p44 = scmp.eq.s32.totalorder %s22, 1
      %p45 = por %p43, %p44
      %p47 = scmp.ne.s32.totalorder %s30, %s46
      %p48 = scmp.eq.s32.totalorder %s22, 0
      %p49 = por %p47, %p48
      %s51 = sadd.s32 %s50, 1
      %p54 = scmp.eq.s32.totalorder %s16, 1
      %p55 = scmp.ne.s32.totalorder %s50, %s52
      %p56 = scmp.eq.s32.totalorder %s16, 0
      %p57 = por %p55, %p56
      %p58 = scmp.ne.s32.totalorder %s50, %s52
      %p59 = scmp.eq.s32.totalorder %s21, 1
      %p60 = por %p58, %p59
      %p61 = scmp.ne.s32.totalorder %s52, %s53
      %p62 = scmp.eq.s32.totalorder %s21, 0
      %p63 = por %p61, %p62
      %p64 = scmp.ne.s32.totalorder %s52, %s53
      %p65 = scmp.eq.s32.totalorder %s22, 1
      %p66 = por %p64, %p65
      %p68 = scmp.ne.s32.totalorder %s53, %s67
      %p69 = scmp.eq.s32.totalorder %s22, 0
      %p70 = por %p68, %p69
      %s72 = sadd.s32 %s71, 1
      %p75 = scmp.eq.s32.totalorder %s16, 1
      %p76 = scmp.ne.s32.totalorder %s71, %s73
      %p77 = scmp.eq.s32.totalorder %s16, 0
      %p78 = por %p76, %p77
      %p79 = scmp.ne.s32.totalorder %s71, %s73
      %p80 = scmp.eq.s32.totalorder %s21, 1
      %p81 = por %p79, %p80
      %p82 = scmp.ne.s32.totalorder %s73, %s74
      %p83 = scmp.eq.s32.totalorder %s21, 0
      %p84 = por %p82, %p83
      %p85 = scmp.ne.s32.totalorder %s73, %s74
      %p86 = scmp.eq.s32.totalorder %s22, 1
      %p87 = por %p85, %p86
      %p89 = scmp.ne.s32.totalorder %s74, %s88
      %p90 = scmp.eq.s32.totalorder %s22, 0
      %p91 = por %p89, %p90
      %s93 = sadd.s32 %s92, 1
      %p96 = scmp.eq.s32.totalorder %s16, 1
      %p97 = scmp.ne.s32.totalorder %s92, %s94
      %p98 = scmp.eq.s32.totalorder %s16, 0
      %p99 = por %p97, %p98
      %p100 = scmp.ne.s32.totalorder %s92, %s94
      %p101 = scmp.eq.s32.totalorder %s21, 1
      %p102 = por %p100, %p101
      %p103 = scmp.ne.s32.totalorder %s94, %s95
      %p104 = scmp.eq.s32.totalorder %s21, 0
      %p105 = por %p103, %p104
      %p106 = scmp.ne.s32.totalorder %s94, %s95
      %p107 = scmp.eq.s32.totalorder %s22, 1
      %p108 = por %p106, %p107
      %p110 = scmp.ne.s32.totalorder %s95, %s109
      %p111 = scmp.eq.s32.totalorder %s22, 0
      %p112 = por %p110, %p111
      %s114 = sadd.s32 %s113, 1
      %p117 = scmp.eq.s32.totalorder %s16, 1
      %p118 = scmp.ne.s32.totalorder %s113, %s115
      %p119 = scmp.eq.s32.totalorder %s16, 0
      %p120 = por %p118, %p119
      %p121 = scmp.ne.s32.totalorder %s113, %s115
      %p122 = scmp.eq.s32.totalorder %s21, 1
      %p123 = por %p121, %p122
      %p124 = scmp.ne.s32.totalorder %s115, %s116
      %p125 = scmp.eq.s32.totalorder %s21, 0
      %p126 = por %p124, %p125
      %p127 = scmp.ne.s32.totalorder %s115, %s116
      %p128 = scmp.eq.s32.totalorder %s22, 1
      %p129 = por %p127, %p128
      %p131 = scmp.ne.s32.totalorder %s116, %s130
      %p132 = scmp.eq.s32.totalorder %s22, 0
      %p133 = por %p131, %p132
      %s135 = sadd.s32 %s134, 1
      %p138 = scmp.eq.s32.totalorder %s16, 1
      %p139 = scmp.ne.s32.totalorder %s134, %s136
      %p140 = scmp.eq.s32.totalorder %s16, 0
      %p141 = por %p139, %p140
      %p142 = scmp.ne.s32.totalorder %s134, %s136
      %p143 = scmp.eq.s32.totalorder %s21, 1
      %p144 = por %p142, %p143
      %p145 = scmp.ne.s32.totalorder %s136, %s137
      %p146 = scmp.eq.s32.totalorder %s21, 0
      %p147 = por %p145, %p146
      %p148 = scmp.ne.s32.totalorder %s136, %s137
      %p149 = scmp.eq.s32.totalorder %s22, 1
      %p150 = por %p148, %p149
      %p152 = scmp.ne.s32.totalorder %s137, %s151
      %p153 = scmp.eq.s32.totalorder %s22, 0
      %p154 = por %p152, %p153
      %s156 = sadd.s32 %s155, 1
      %p159 = scmp.eq.s32.totalorder %s16, 1
      %p160 = scmp.ne.s32.totalorder %s155, %s157
      %p161 = scmp.eq.s32.totalorder %s16, 0
      %p162 = por %p160, %p161
      %p163 = scmp.ne.s32.totalorder %s155, %s157
      %p164 = scmp.eq.s32.totalorder %s21, 1
      %p165 = por %p163, %p164
      %p166 = scmp.ne.s32.totalorder %s157, %s158
      %p167 = scmp.eq.s32.totalorder %s21, 0
      %p168 = por %p166, %p167
      %p169 = scmp.ne.s32.totalorder %s157, %s158
      %p170 = scmp.eq.s32.totalorder %s22, 1
      %p171 = por %p169, %p170
      %p173 = scmp.ne.s32.totalorder %s158, %s172
      %p174 = scmp.eq.s32.totalorder %s22, 0
      %p175 = por %p173, %p174
      %s176 = ssub.s32 %s16, %s23
      %p177 = scmp.eq.s32.totalorder %s176, 0
      %s179 = sadd.s32 %s178, 1
      %s180 = scalar_select %p177, %s178, %s179
      %p183 = pneg %p177
      %p184 = scmp.eq.s32.totalorder %s16, 1
      %p185 = por %p183, %p184
      %p186 = scmp.ne.s32.totalorder %s178, %s181
      %p187 = scmp.eq.s32.totalorder %s16, 0
      %p188 = por %p186, %p187
      %p189 = scmp.ne.s32.totalorder %s178, %s181
      %p190 = scmp.eq.s32.totalorder %s21, 1
      %p191 = por %p189, %p190
      %p192 = scmp.ne.s32.totalorder %s181, %s182
      %p193 = scmp.eq.s32.totalorder %s21, 0
      %p194 = por %p192, %p193
      %p195 = scmp.ne.s32.totalorder %s181, %s182
      %p196 = scmp.eq.s32.totalorder %s22, 1
      %p197 = por %p195, %p196
      %p199 = scmp.ne.s32.totalorder %s182, %s198
      %p200 = scmp.eq.s32.totalorder %s22, 0
      %p201 = por %p199, %p200
      %p202 = scmp.le.s32.totalorder 1, %s16
      %p203 = scmp.lt.s32.totalorder %s16, 3
      %p204 = pnand %p202, %p203
      %p205 = pneg %p204
      // Predicated region
      $region9: #{tpu_custom_call.1} parent=5 // pred_check
        _
      $region10: #{tpu_custom_call.1} parent=5 // pred_check_branch
        %207 = sbr.rel (%p204) target = $region12
      $region11: #{tpu_custom_call.1} parent=5 // pred_region
        %s208 = ssub.s32 %s16, 1
        // Predicated region
        $region13: #{tpu_custom_call.1} parent=11 // pred_check
          %p209 = pneg %p63
        $region14: #{tpu_custom_call.1} parent=11 // pred_check_branch
          %211 = sbr.rel (%p209) target = $region16
        $region15: #{tpu_custom_call.1} parent=11 // pred_region
          _
        $region16: #{tpu_custom_call.1} parent=11 // pred_fallthru
          _
        // Predicated region
        $region17: #{tpu_custom_call.1} parent=11 // pred_check
          %p212 = pneg %p84
        $region18: #{tpu_custom_call.1} parent=11 // pred_check_branch
          %214 = sbr.rel (%p212) target = $region20
        $region19: #{tpu_custom_call.1} parent=11 // pred_region
          _
        $region20: #{tpu_custom_call.1} parent=11 // pred_fallthru
          _
        // Predicated region
        $region21: #{tpu_custom_call.1} parent=11 // pred_check
          %p215 = pneg %p105
        $region22: #{tpu_custom_call.1} parent=11 // pred_check_branch
          %217 = sbr.rel (%p215) target = $region24
        $region23: #{tpu_custom_call.1} parent=11 // pred_region
          _
        $region24: #{tpu_custom_call.1} parent=11 // pred_fallthru
          _
        // Predicated region
        $region25: #{tpu_custom_call.1} parent=11 // pred_check
          %p218 = pneg %p126
        $region26: #{tpu_custom_call.1} parent=11 // pred_check_branch
          %220 = sbr.rel (%p218) target = $region28
        $region27: #{tpu_custom_call.1} parent=11 // pred_region
          _
        $region28: #{tpu_custom_call.1} parent=11 // pred_fallthru
          _
        // Predicated region
        $region29: #{tpu_custom_call.1} parent=11 // pred_check
          %p221 = pneg %p147
        $region30: #{tpu_custom_call.1} parent=11 // pred_check_branch
          %223 = sbr.rel (%p221) target = $region32
        $region31: #{tpu_custom_call.1} parent=11 // pred_region
          _
        $region32: #{tpu_custom_call.1} parent=11 // pred_fallthru
          _
        // Predicated region
        $region33: #{tpu_custom_call.1} parent=11 // pred_check
          %p224 = pneg %p168
        $region34: #{tpu_custom_call.1} parent=11 // pred_check_branch
          %226 = sbr.rel (%p224) target = $region36
        $region35: #{tpu_custom_call.1} parent=11 // pred_region
          _
        $region36: #{tpu_custom_call.1} parent=11 // pred_fallthru
          _
      $region12: #{tpu_custom_call.1} parent=5 // pred_fallthru
        _
      %p227 = scmp.lt.s32.totalorder %s16, 2
      // Predicated region
      $region37: #{tpu_custom_call.1} parent=5 // pred_check
        %p228 = pneg %p227
      $region38: #{tpu_custom_call.1} parent=5 // pred_check_branch
        %230 = sbr.rel (%p228) target = $region40
      $region39: #{tpu_custom_call.1} parent=5 // pred_region
        // Predicated region
        $region41: #{tpu_custom_call.1} parent=39 // pred_check
          %p231 = pneg %p36
        $region42: #{tpu_custom_call.1} parent=39 // pred_check_branch
          %233 = sbr.rel (%p231) target = $region44
        $region43: #{tpu_custom_call.1} parent=39 // pred_region
          %s234 = smul.u32 32, %s16
          %p235 = scmp.lt.s32.totalorder %s234, 63
          %s236 = scalar_select %p235, %s234, 63
          %s237 = smul.addr %s236, 8
          %s238 = scalar_lea.vmem %s0, %s237
          %s239 = smul.u32 32, %s16
        $region44: #{tpu_custom_call.1} parent=39 // pred_fallthru
          _
      $region40: #{tpu_custom_call.1} parent=5 // pred_fallthru
        _
      %p240 = scmp.le.s32.totalorder 1, %s16
      %p241 = scmp.lt.s32.totalorder %s16, 3
      %p242 = pnand %p240, %p241
      %p243 = pneg %p242
      // Predicated region
      $region45: #{tpu_custom_call.1} parent=5 // pred_check
        _
      $region46: #{tpu_custom_call.1} parent=5 // pred_check_branch
        %245 = sbr.rel (%p242) target = $region48
      $region47: #{tpu_custom_call.1} parent=5 // pred_region
        %s246 = ssub.s32 %s16, 1
        %s247 = smul.u32 32, %s21
        %p248 = scmp.lt.s32.totalorder %s247, 63
        %s249 = scalar_select %p248, %s247, 63
        %s250 = smul.addr %s249, 8
        %s251 = scalar_lea.vmem %s0, %s250
        %p252 = pneg %p42
        %p253 = pneg %p39
        %p254 = pneg %p63
        %p255 = pneg %p60
        %p256 = pneg %p84
        %p257 = pneg %p81
        %p258 = pneg %p105
        %p259 = pneg %p102
        %p260 = pneg %p126
        %p261 = pneg %p123
        %p262 = pneg %p147
        %p263 = pneg %p144
        %p264 = pneg %p168
        %p265 = pneg %p165
        %p266 = pneg %p194
        %p267 = pneg %p191
        %s268 = sand.u32 %s181, 1
        %s269 = scalar_lea.sflag [#allocation3], %s268
        %s270 = sand.u32 %s181, 1
        %s271 = smul.addr %s270, 32
        %s272 = scalar_lea.vmem [#allocation2], %s271
        %s273 = smul.u32 32, %s21
        %p274 = scmp.lt.s32.totalorder %s273, 63
        %s275 = scalar_select %p274, %s273, 63
        %s276 = smul.addr %s275, 8
        %s277 = scalar_lea.vmem %s0, %s276
        %s278 = smul.u32 32, %s21
        %s279 = smul.u32 2, %s21
        %v281 = vld [vmem:[%s277] sm:$0xff]
        %v282 = vld [vmem:[%s277 + $0x8] sm:$0xff]
        %v283 = vld [vmem:[%s277 + $0x10] sm:$0xff]
        %v284 = vld [vmem:[%s277 + $0x18] sm:$0xff]
        %v285 = vld [vmem:[%s277 + $0x20] sm:$0xff]
        %v286 = vld [vmem:[%s277 + $0x28] sm:$0xff]
        %v287 = vld [vmem:[%s277 + $0x30] sm:$0xff]
        %v288 = vld [vmem:[%s277 + $0x38] sm:$0xff]
        %v289 = vld [vmem:[%s277 + $0x40] sm:$0xff]
        %v290 = vld [vmem:[%s277 + $0x48] sm:$0xff]
        %v291 = vld [vmem:[%s277 + $0x50] sm:$0xff]
        %v292 = vld [vmem:[%s277 + $0x58] sm:$0xff]
        %v293 = vld [vmem:[%s277 + $0x60] sm:$0xff]
        %v294 = vld [vmem:[%s277 + $0x68] sm:$0xff]
        %v295 = vld [vmem:[%s277 + $0x70] sm:$0xff]
        %v296 = vld [vmem:[%s277 + $0x78] sm:$0xff]
        %v297 = vld [vmem:[%s277 + $0x80] sm:$0xff]
        %v298 = vld [vmem:[%s277 + $0x88] sm:$0xff]
        %v299 = vld [vmem:[%s277 + $0x90] sm:$0xff]
        %v300 = vld [vmem:[%s277 + $0x98] sm:$0xff]
        %v301 = vld [vmem:[%s277 + $0xa0] sm:$0xff]
        %v302 = vld [vmem:[%s277 + $0xa8] sm:$0xff]
        %v303 = vld [vmem:[%s277 + $0xb0] sm:$0xff]
        %v304 = vld [vmem:[%s277 + $0xb8] sm:$0xff]
        %v305 = vld [vmem:[%s277 + $0xc0] sm:$0xff]
        %v306 = vld [vmem:[%s277 + $0xc8] sm:$0xff]
        %v307 = vld [vmem:[%s277 + $0xd0] sm:$0xff]
        %v308 = vld [vmem:[%s277 + $0xd8] sm:$0xff]
        %v309 = vld [vmem:[%s277 + $0xe0] sm:$0xff]
        %v310 = vld [vmem:[%s277 + $0xe8] sm:$0xff]
        %v311 = vld [vmem:[%s277 + $0xf0] sm:$0xff]
        %v312 = vld [vmem:[%s277 + $0xf8] sm:$0xff]
        %v313 = vpack.c.bf16 %v282, %v281
        %v314 = vpack.c.bf16 %v284, %v283
        %v315 = vpack.c.bf16 %v286, %v285
        %v316 = vpack.c.bf16 %v288, %v287
        %v317 = vpack.c.bf16 %v290, %v289
        %v318 = vpack.c.bf16 %v292, %v291
        %v319 = vpack.c.bf16 %v294, %v293
        %v320 = vpack.c.bf16 %v296, %v295
        %v321 = vpack.c.bf16 %v298, %v297
        %v322 = vpack.c.bf16 %v300, %v299
        %v323 = vpack.c.bf16 %v302, %v301
        %v324 = vpack.c.bf16 %v304, %v303
        %v325 = vpack.c.bf16 %v306, %v305
        %v326 = vpack.c.bf16 %v308, %v307
        %v327 = vpack.c.bf16 %v310, %v309
        %v328 = vpack.c.bf16 %v312, %v311
        %v329 = vld [vmem:[%s1] sm:$0xf]
        %v330 = vld [vmem:[%s1 + $0x4] sm:$0xf]
        %v331 = vld [vmem:[%s1 + $0x8] sm:$0xf]
        %v332 = vld [vmem:[%s1 + $0xc] sm:$0xf]
        %v333 = vld [vmem:[%s1 + $0x10] sm:$0xf]
        %v334 = vld [vmem:[%s1 + $0x14] sm:$0xf]
        %v335 = vld [vmem:[%s1 + $0x18] sm:$0xf]
        %v336 = vld [vmem:[%s1 + $0x1c] sm:$0xf]
        %v337 = vld [vmem:[%s2] sm:$0xff]
        %v338 = vld [vmem:[%s2 + $0x8] sm:$0xff]
        %v339 = vld [vmem:[%s2 + $0x10] sm:$0xff]
        %v340 = vld [vmem:[%s2 + $0x18] sm:$0xff]
        %v341 = vld [vmem:[%s2 + $0x20] sm:$0xff]
        %v342 = vld [vmem:[%s2 + $0x28] sm:$0xff]
        %v343 = vld [vmem:[%s2 + $0x30] sm:$0xff]
        %v344 = vld [vmem:[%s2 + $0x38] sm:$0xff]
        %346 = vset.pattern.permute.xlu0 0
        %347 = vperm.xlu0 %346, %v337
        %v348 = vpop.permute.xlu0 %347
        %351 = vset.pattern.permute.xlu0 0
        %352 = vperm.xlu0 %351, %v338
        %v353 = vpop.permute.xlu0 %352
        %356 = vset.pattern.permute.xlu0 0
        %357 = vperm.xlu0 %356, %v339
        %v358 = vpop.permute.xlu0 %357
        %361 = vset.pattern.permute.xlu0 0
        %362 = vperm.xlu0 %361, %v340
        %v363 = vpop.permute.xlu0 %362
        %366 = vset.pattern.permute.xlu0 0
        %367 = vperm.xlu0 %366, %v341
        %v368 = vpop.permute.xlu0 %367
        %371 = vset.pattern.permute.xlu0 0
        %372 = vperm.xlu0 %371, %v342
        %v373 = vpop.permute.xlu0 %372
        %376 = vset.pattern.permute.xlu0 0
        %377 = vperm.xlu0 %376, %v343
        %v378 = vpop.permute.xlu0 %377
        %381 = vset.pattern.permute.xlu0 0
        %382 = vperm.xlu0 %381, %v344
        %v383 = vpop.permute.xlu0 %382
        %v393 = vunpack.c.l.b16 %v329
        %v394 = vunpack.c.l.b16 %v330
        %v395 = vunpack.c.l.b16 %v331
        %v396 = vunpack.c.l.b16 %v332
        %v397 = vunpack.c.l.b16 %v333
        %v398 = vunpack.c.l.b16 %v334
        %v399 = vunpack.c.l.b16 %v335
        %v400 = vunpack.c.l.b16 %v336
        %v401 = vpack.c.b16 %v394, %v393
        %v402 = vpack.c.b16 %v396, %v395
        %v403 = vpack.c.b16 %v398, %v397
        %v404 = vpack.c.b16 %v400, %v399
        %vm405 = vcmask 261120
        %v407 = vsel %vm405, %v401, 0
        %v410 = vsel %vm405, %v402, 0
        %v413 = vsel %vm405, %v403, 0
        %v416 = vsel %vm405, %v404, 0
        %v419 = vsel %vm405, %v313, 0
        %v422 = vsel %vm405, %v314, 0
        %v425 = vsel %vm405, %v315, 0
        %v428 = vsel %vm405, %v316, 0
        %v431 = vsel %vm405, %v317, 0
        %v434 = vsel %vm405, %v318, 0
        %v437 = vsel %vm405, %v319, 0
        %v440 = vsel %vm405, %v320, 0
        %v443 = vsel %vm405, %v321, 0
        %v446 = vsel %vm405, %v322, 0
        %v449 = vsel %vm405, %v323, 0
        %v452 = vsel %vm405, %v324, 0
        %v455 = vsel %vm405, %v325, 0
        %v458 = vsel %vm405, %v326, 0
        %v461 = vsel %vm405, %v327, 0
        %v464 = vsel %vm405, %v328, 0
        %466 = vmatpush.bf16.xpose.msra.mxu0 %v440
        %467 = vmatpush.bf16.xpose.msra.mxu0 %v437
        %468 = vmatpush.bf16.xpose.msra.mxu0 %v434
        %469 = vmatpush.bf16.xpose.msra.mxu0 %v431
        %470 = vmatpush.bf16.xpose.msra.mxu0 %v428
        %471 = vmatpush.bf16.xpose.msra.mxu0 %v425
        %472 = vmatpush.bf16.xpose.msra.mxu0 %v422
        %473 = vmatpush.bf16.xpose.msra.mxu0 %v419
        %474 = vmatmul.bf16.gmra.mxu0 %v407
        %v475 = vpop.f32.mrf.mxu0
        %v476 = vadd.f32 %v348, %v475
        %v477 = vpop.f32.mrf.mxu0
        %v478 = vadd.f32 %v353, %v477
        %479 = vmatmul.bf16.gmra.mxu0 %v410
        %v480 = vpop.f32.mrf.mxu0
        %v481 = vadd.f32 %v358, %v480
        %v482 = vpop.f32.mrf.mxu0
        %v483 = vadd.f32 %v363, %v482
        %484 = vmatmul.bf16.gmra.mxu0 %v413
        %v485 = vpop.f32.mrf.mxu0
        %v486 = vadd.f32 %v368, %v485
        %v487 = vpop.f32.mrf.mxu0
        %v488 = vadd.f32 %v373, %v487
        %489 = vmatmul.bf16.gmra.mxu0 %v416
        %v490 = vpop.f32.mrf.mxu0
        %v491 = vadd.f32 %v378, %v490
        %v492 = vpop.f32.mrf.mxu0
        %v493 = vadd.f32 %v383, %v492
        %494 = vdwg.mxu0
        %495 = vmatpush.bf16.xpose.msra.mxu0 %v464
        %496 = vmatpush.bf16.xpose.msra.mxu0 %v461
        %497 = vmatpush.bf16.xpose.msra.mxu0 %v458
        %498 = vmatpush.bf16.xpose.msra.mxu0 %v455
        %499 = vmatpush.bf16.xpose.msra.mxu0 %v452
        %500 = vmatpush.bf16.xpose.msra.mxu0 %v449
        %501 = vmatpush.bf16.xpose.msra.mxu0 %v446
        %502 = vmatpush.bf16.xpose.msra.mxu0 %v443
        %503 = vmatmul.bf16.gmra.mxu0 %v407
        %v504 = vpop.f32.mrf.mxu0
        %v505 = vadd.f32 %v348, %v504
        %v506 = vpop.f32.mrf.mxu0
        %v507 = vadd.f32 %v353, %v506
        %508 = vmatmul.bf16.gmra.mxu0 %v410
        %v509 = vpop.f32.mrf.mxu0
        %v510 = vadd.f32 %v358, %v509
        %v511 = vpop.f32.mrf.mxu0
        %v512 = vadd.f32 %v363, %v511
        %513 = vmatmul.bf16.gmra.mxu0 %v413
        %v514 = vpop.f32.mrf.mxu0
        %v515 = vadd.f32 %v368, %v514
        %v516 = vpop.f32.mrf.mxu0
        %v517 = vadd.f32 %v373, %v516
        %518 = vmatmul.bf16.gmra.mxu0 %v416
        %v519 = vpop.f32.mrf.mxu0
        %v520 = vadd.f32 %v378, %v519
        %v521 = vpop.f32.mrf.mxu0
        %v522 = vadd.f32 %v383, %v521
        %523 = vdwg.mxu0
        %v524 = vmul.f32 %v476, 0.01
        %v525 = vmul.f32 %v505, 0.01
        %v526 = vmul.f32 %v478, 0.01
        %v527 = vmul.f32 %v507, 0.01
        %v528 = vmul.f32 %v481, 0.01
        %v529 = vmul.f32 %v510, 0.01
        %v530 = vmul.f32 %v483, 0.01
        %v531 = vmul.f32 %v512, 0.01
        %v532 = vmul.f32 %v486, 0.01
        %v533 = vmul.f32 %v515, 0.01
        %v534 = vmul.f32 %v488, 0.01
        %v535 = vmul.f32 %v517, 0.01
        %v536 = vmul.f32 %v491, 0.01
        %v537 = vmul.f32 %v520, 0.01
        %v538 = vmul.f32 %v493, 0.01
        %v539 = vmul.f32 %v522, 0.01
        %v540 = vmax.f32 %v476, %v524
        %v541 = vmax.f32 %v505, %v525
        %v542 = vmax.f32 %v478, %v526
        %v543 = vmax.f32 %v507, %v527
        %v544 = vmax.f32 %v481, %v528
        %v545 = vmax.f32 %v510, %v529
        %v546 = vmax.f32 %v483, %v530
        %v547 = vmax.f32 %v512, %v531
        %v548 = vmax.f32 %v486, %v532
        %v549 = vmax.f32 %v515, %v533
        %v550 = vmax.f32 %v488, %v534
        %v551 = vmax.f32 %v517, %v535
        %v552 = vmax.f32 %v491, %v536
        %v553 = vmax.f32 %v520, %v537
        %v554 = vmax.f32 %v493, %v538
        %v555 = vmax.f32 %v522, %v539
        %v556 = vld [vmem:[%s3] sm:$0xf]
        %v557 = vld [vmem:[%s3 + $0x4] sm:$0xf]
        %v558 = vld [vmem:[%s3 + $0x8] sm:$0xf]
        %v559 = vld [vmem:[%s3 + $0xc] sm:$0xf]
        %v560 = vld [vmem:[%s3 + $0x10] sm:$0xf]
        %v561 = vld [vmem:[%s3 + $0x14] sm:$0xf]
        %v562 = vpack.c.bf16 %v542, %v540
        %v563 = vpack.c.bf16 %v543, %v541
        %v564 = vpack.c.bf16 %v546, %v544
        %v565 = vpack.c.bf16 %v547, %v545
        %v566 = vpack.c.bf16 %v550, %v548
        %v567 = vpack.c.bf16 %v551, %v549
        %v568 = vpack.c.bf16 %v554, %v552
        %v569 = vpack.c.bf16 %v555, %v553
        %v570 = vld [vmem:[%s4] sm:$0xff]
        %v571 = vld [vmem:[%s4 + $0x8] sm:$0xff]
        %v572 = vld [vmem:[%s4 + $0x10] sm:$0xff]
        %v573 = vld [vmem:[%s4 + $0x18] sm:$0xff]
        %v574 = vld [vmem:[%s4 + $0x20] sm:$0xff]
        %v575 = vld [vmem:[%s4 + $0x28] sm:$0xff]
        %577 = vset.pattern.permute.xlu0 0
        %578 = vperm.xlu0 %577, %v570
        %v579 = vpop.permute.xlu0 %578
        %582 = vset.pattern.permute.xlu0 0
        %583 = vperm.xlu0 %582, %v571
        %v584 = vpop.permute.xlu0 %583
        %587 = vset.pattern.permute.xlu0 0
        %588 = vperm.xlu0 %587, %v572
        %v589 = vpop.permute.xlu0 %588
        %592 = vset.pattern.permute.xlu0 0
        %593 = vperm.xlu0 %592, %v573
        %v594 = vpop.permute.xlu0 %593
        %597 = vset.pattern.permute.xlu0 0
        %598 = vperm.xlu0 %597, %v574
        %v599 = vpop.permute.xlu0 %598
        %602 = vset.pattern.permute.xlu0 0
        %603 = vperm.xlu0 %602, %v575
        %v604 = vpop.permute.xlu0 %603
        %v612 = vunpack.c.l.b16 %v556
        %v613 = vunpack.c.l.b16 %v557
        %v614 = vunpack.c.l.b16 %v558
        %v615 = vunpack.c.l.b16 %v559
        %v616 = vunpack.c.l.b16 %v560
        %v617 = vunpack.c.l.b16 %v561
        %v618 = vpack.c.b16 %v613, %v612
        %v619 = vpack.c.b16 %v615, %v614
        %v620 = vpack.c.b16 %v617, %v616
        %vm621 = vcmask 523264
        %v623 = vsel %vm621, %v618, 0
        %v626 = vsel %vm621, %v619, 0
        %v629 = vsel %vm621, %v620, 0
        %631 = vmatpush.bf16.msra.mxu0 0
        %632 = vmatpush.bf16.msra.mxu0 0
        %633 = vmatpush.bf16.msra.mxu0 0
        %634 = vmatpush.bf16.msra.mxu0 0
        %635 = vmatpush.bf16.msra.mxu0 %v568
        %636 = vmatpush.bf16.msra.mxu0 %v566
        %637 = vmatpush.bf16.msra.mxu0 %v564
        %638 = vmatpush.bf16.msra.mxu0 %v562
        %639 = vmatmul.bf16.gmra.mxu0 %v623
        %v640 = vpop.f32.mrf.mxu0
        %v641 = vadd.f32 %v579, %v640
        %v642 = vpop.f32.mrf.mxu0
        %v643 = vadd.f32 %v584, %v642
        %644 = vmatmul.bf16.gmra.mxu0 %v626
        %v645 = vpop.f32.mrf.mxu0
        %v646 = vadd.f32 %v589, %v645
        %v647 = vpop.f32.mrf.mxu0
        %v648 = vadd.f32 %v594, %v647
        %649 = vmatmul.bf16.gmra.mxu0 %v629
        %v650 = vpop.f32.mrf.mxu0
        %v651 = vadd.f32 %v599, %v650
        %v652 = vpop.f32.mrf.mxu0
        %v653 = vadd.f32 %v604, %v652
        %654 = vdwg.mxu0
        %655 = vmatpush.bf16.msra.mxu0 0
        %656 = vmatpush.bf16.msra.mxu0 0
        %657 = vmatpush.bf16.msra.mxu0 0
        %658 = vmatpush.bf16.msra.mxu0 0
        %659 = vmatpush.bf16.msra.mxu0 %v569
        %660 = vmatpush.bf16.msra.mxu0 %v567
        %661 = vmatpush.bf16.msra.mxu0 %v565
        %662 = vmatpush.bf16.msra.mxu0 %v563
        %663 = vmatmul.bf16.gmra.mxu0 %v623
        %v664 = vpop.f32.mrf.mxu0
        %v665 = vadd.f32 %v579, %v664
        %v666 = vpop.f32.mrf.mxu0
        %v667 = vadd.f32 %v584, %v666
        %668 = vmatmul.bf16.gmra.mxu0 %v626
        %v669 = vpop.f32.mrf.mxu0
        %v670 = vadd.f32 %v589, %v669
        %v671 = vpop.f32.mrf.mxu0
        %v672 = vadd.f32 %v594, %v671
        %673 = vmatmul.bf16.gmra.mxu0 %v629
        %v674 = vpop.f32.mrf.mxu0
        %v675 = vadd.f32 %v599, %v674
        %v676 = vpop.f32.mrf.mxu0
        %v677 = vadd.f32 %v604, %v676
        %678 = vdwg.mxu0
        %v679 = vmul.f32 %v641, 0.01
        %v680 = vmul.f32 %v665, 0.01
        %v681 = vmul.f32 %v643, 0.01
        %v682 = vmul.f32 %v667, 0.01
        %v683 = vmul.f32 %v646, 0.01
        %v684 = vmul.f32 %v670, 0.01
        %v685 = vmul.f32 %v648, 0.01
        %v686 = vmul.f32 %v672, 0.01
        %v687 = vmul.f32 %v651, 0.01
        %v688 = vmul.f32 %v675, 0.01
        %v689 = vmul.f32 %v653, 0.01
        %v690 = vmul.f32 %v677, 0.01
        %v691 = vmax.f32 %v641, %v679
        %v692 = vmax.f32 %v665, %v680
        %v693 = vmax.f32 %v643, %v681
        %v694 = vmax.f32 %v667, %v682
        %v695 = vmax.f32 %v646, %v683
        %v696 = vmax.f32 %v670, %v684
        %v697 = vmax.f32 %v648, %v685
        %v698 = vmax.f32 %v672, %v686
        %v699 = vmax.f32 %v651, %v687
        %v700 = vmax.f32 %v675, %v688
        %v701 = vmax.f32 %v653, %v689
        %v702 = vmax.f32 %v677, %v690
        %v703 = vld [vmem:[%s5] sm:$0xf]
        %v704 = vld [vmem:[%s5 + $0x4] sm:$0xf]
        %v705 = vpack.c.bf16 %v693, %v691
        %v706 = vpack.c.bf16 %v694, %v692
        %v707 = vpack.c.bf16 %v697, %v695
        %v708 = vpack.c.bf16 %v698, %v696
        %v709 = vpack.c.bf16 %v701, %v699
        %v710 = vpack.c.bf16 %v702, %v700
        %v711 = vld [vmem:[%s6] sm:$0xff]
        %v712 = vld [vmem:[%s6 + $0x8] sm:$0xff]
        %714 = vset.pattern.permute.xlu0 0
        %715 = vperm.xlu0 %714, %v711
        %v716 = vpop.permute.xlu0 %715
        %719 = vset.pattern.permute.xlu0 0
        %720 = vperm.xlu0 %719, %v712
        %v721 = vpop.permute.xlu0 %720
        %v725 = vunpack.c.l.b16 %v703
        %v726 = vunpack.c.l.b16 %v704
        %v727 = vpack.c.b16 %v726, %v725
        %vm728 = vcmask 392192
        %v730 = vsel %vm728, %v727, 0
        %732 = vmatpush.bf16.msra.mxu0 0
        %733 = vmatpush.bf16.msra.mxu0 0
        %734 = vmatpush.bf16.msra.mxu0 0
        %735 = vmatpush.bf16.msra.mxu0 0
        %736 = vmatpush.bf16.msra.mxu0 0
        %737 = vmatpush.bf16.msra.mxu0 %v709
        %738 = vmatpush.bf16.msra.mxu0 %v707
        %739 = vmatpush.bf16.msra.mxu0 %v705
        %740 = vmatmul.bf16.gmra.mxu0 %v730
        %v741 = vpop.f32.mrf.mxu0
        %v742 = vadd.f32 %v716, %v741
        %v743 = vpop.f32.mrf.mxu0
        %v744 = vadd.f32 %v721, %v743
        %745 = vdwg.mxu0
        %746 = vmatpush.bf16.msra.mxu0 0
        %747 = vmatpush.bf16.msra.mxu0 0
        %748 = vmatpush.bf16.msra.mxu0 0
        %749 = vmatpush.bf16.msra.mxu0 0
        %750 = vmatpush.bf16.msra.mxu0 0
        %751 = vmatpush.bf16.msra.mxu0 %v710
        %752 = vmatpush.bf16.msra.mxu0 %v708
        %753 = vmatpush.bf16.msra.mxu0 %v706
        %754 = vmatmul.bf16.gmra.mxu0 %v730
        %v755 = vpop.f32.mrf.mxu0
        %v756 = vadd.f32 %v716, %v755
        %v757 = vpop.f32.mrf.mxu0
        %v758 = vadd.f32 %v721, %v757
        %759 = vdwg.mxu0
        %760 = vst [vmem:[%s272] sm:$0xff] %v742
        %761 = vst [vmem:[%s272 + $0x8] sm:$0xff] %v756
        %762 = vst [vmem:[%s272 + $0x10] sm:$0xff] %v744
        %763 = vst [vmem:[%s272 + $0x18] sm:$0xff] %v758
        %s764 = sand.u32 %s181, 1
        %s765 = scalar_lea.sflag [#allocation3], %s764
        %s766 = sand.u32 %s181, 1
        %s767 = smul.addr %s766, 32
        %s768 = scalar_lea.vmem [#allocation2], %s767
        // Predicated region
        $region49: #{tpu_custom_call.1} parent=47 // pred_check
          %p769 = pneg %p191
        $region50: #{tpu_custom_call.1} parent=47 // pred_check_branch
          %771 = sbr.rel (%p769) target = $region52
        $region51: #{tpu_custom_call.1} parent=47 // pred_region
          %s772 = smul.u32 2, %s21
          %774 = vsyncadd %s765, 0
          %s775 = smul.addr %s772, 8
          %s776 = scalar_lea.hbm %s7, %s775
          %s777 = sshll.u32 %s768, 4
          %s778 = int_to_ptr.vmem [resolvable:$true] %s777
          %s779 = sshll.u32 %s776, 4
          %s780 = int_to_ptr.hbm [resolvable:$true] %s779
          %785 = dma.vmem_to_hbm [thread:$0]  %s778, 512, %s780, %s765, 256, 512, 16
        $region52: #{tpu_custom_call.1} parent=47 // pred_fallthru
          _
      $region48: #{tpu_custom_call.1} parent=5 // pred_fallthru
        _
      %p786 = scmp.le.s32.totalorder 2, %s16
      // Predicated region
      $region53: #{tpu_custom_call.1} parent=5 // pred_check
        %p787 = pneg %p786
      $region54: #{tpu_custom_call.1} parent=5 // pred_check_branch
        %789 = sbr.rel (%p787) target = $region56
      $region55: #{tpu_custom_call.1} parent=5 // pred_region
        %s790 = ssub.s32 %s16, 2
        // Predicated region
        $region57: #{tpu_custom_call.1} parent=55 // pred_check
          %p791 = pneg %p197
        $region58: #{tpu_custom_call.1} parent=55 // pred_check_branch
          %793 = sbr.rel (%p791) target = $region60
        $region59: #{tpu_custom_call.1} parent=55 // pred_region
          %s794 = sand.u32 %s182, 1
          %s795 = scalar_lea.sflag [#allocation3], %s794
          %s796 = sand.u32 %s182, 1
          %s797 = smul.addr %s796, 32
          %s798 = scalar_lea.vmem [#allocation2], %s797
          %800 = dma.done %s795, 512
        $region60: #{tpu_custom_call.1} parent=55 // pred_fallthru
          _
      $region56: #{tpu_custom_call.1} parent=5 // pred_fallthru
        _
    $region6: #{tpu_custom_call.1} parent=1 // loop_footer
      %s20 = sadd.s32 1, %s16
    $region7: #{tpu_custom_call.1} parent=1 // loop_footer_branch
      %15 = sbr.rel target = $region3
    $region8: #{tpu_custom_call.1} parent=1 // loop_exit
      _
    %801 = vsyncpa [#allocation3], 1
    %s802 = scalar_lea.sflag [#allocation3], 1
    %803 = vsyncpa %s802, 1

</llo_original>
